<compile_context>
chip_gen: v6e
topology: v6e:2x2x1
jax: 0.10.0
libtpu: 0.0.40
codegen_flags: <defaults>
</compile_context>

<pallas_src>
import functools
from typing import NamedTuple

import jax
import jax.numpy as jnp
from jax.experimental import pallas as pl
from jax.experimental.pallas import tpu as pltpu

EPSILON = 1e-06

_LANE = 128                        # TPU lane width
_MAX_TF_TWO_PASS = 512             # feature-tile cap for the long-T (two-pass) path
_DEFAULT_VMEM = 64 * 1024 * 1024   # conservative fallback (v7x per-TC VMEM)


# --------------------------------------------------------------------------- #
# VMEM budgeting
# --------------------------------------------------------------------------- #
def _vmem_caps():
    """Return (working-set budget, vmem_limit_bytes) derived from the chip."""
    try:
        cap = int(pltpu.get_tpu_info().vmem_capacity_bytes)
    except Exception:
        cap = _DEFAULT_VMEM
    limit = int(cap * 0.75)        # 48 MiB on v7x, 96 MiB on v5e/v6e
    budget = int(limit * 0.70)     # headroom for compiler scratch / pipelining
    return budget, limit


# --------------------------------------------------------------------------- #
# Kernels
# --------------------------------------------------------------------------- #
def _cmvn_fused_kernel(x_ref, o_ref, *, var_norm: bool, t: int):
    # x_ref block: (1, T, TF). Statistics accumulated in f32 (bf16-safe);
    # a single read of the block yields both sum and sum-of-squares, and the
    # normalized result is produced in one store (no materialized `xc` block).
    xf = x_ref[...].astype(jnp.float32)
    inv_t = jnp.float32(1.0 / t)
    mean = jnp.sum(xf, axis=1, keepdims=True) * inv_t            # (1, 1, TF)
    if var_norm:
        sumsq = jnp.sum(xf * xf, axis=1, keepdims=True)
        # torch.var default is unbiased (divide by T-1); clamp var >= 0.
        inv_nm1 = jnp.float32(1.0 / max(t - 1, 1))
        var = jnp.maximum(sumsq - jnp.float32(t) * mean * mean, 0.0) * inv_nm1
        scale = jax.lax.rsqrt(var + jnp.float32(EPSILON))
        o_ref[...] = ((xf - mean) * scale).astype(o_ref.dtype)
    else:
        o_ref[...] = (xf - mean).astype(o_ref.dtype)


def _cmvn_stats_kernel(x_ref, mean_ref, scale_ref, sum_sc, sumsq_sc,
                       *, var_norm: bool, t: int, tt: int):
    # Long-T path, pass 1: accumulate sum / sum-of-squares over T tiles.
    k = pl.program_id(2)

    @pl.when(k == 0)
    def _init():
        sum_sc[...] = jnp.zeros_like(sum_sc)
        sumsq_sc[...] = jnp.zeros_like(sumsq_sc)

    xf = x_ref[...].astype(jnp.float32)
    if t % tt != 0:
        # Mask rows of the last (partial) T tile; OOB rows contribute 0.
        row = k * tt + jax.lax.broadcasted_iota(jnp.int32, xf.shape, 1)
        xf = jnp.where(row < t, xf, 0.0)
    sum_sc[...] += jnp.sum(xf, axis=1, keepdims=True)
    if var_norm:
        sumsq_sc[...] += jnp.sum(xf * xf, axis=1, keepdims=True)

    @pl.when(k == pl.num_programs(2) - 1)
    def _finalize():
        mean = sum_sc[...] * jnp.float32(1.0 / t)
        mean_ref[...] = mean
        if var_norm:
            inv_nm1 = jnp.float32(1.0 / max(t - 1, 1))
            var = jnp.maximum(sumsq_sc[...] - jnp.float32(t) * mean * mean,
                              0.0) * inv_nm1
            scale_ref[...] = jax.lax.rsqrt(var + jnp.float32(EPSILON))
        else:
            scale_ref[...] = jnp.ones_like(scale_ref)


def _cmvn_apply_kernel(x_ref, mean_ref, scale_ref, o_ref):
    # Long-T path, pass 2: y = (x - mean) * scale, tiled over (B, F, T).
    xf = x_ref[...].astype(jnp.float32)
    o_ref[...] = ((xf - mean_ref[...]) * scale_ref[...]).astype(o_ref.dtype)


# --------------------------------------------------------------------------- #
# Tiling plan
# --------------------------------------------------------------------------- #
class _Plan(NamedTuple):
    kind: str     # "fused" | "two_pass"
    tf: int       # feature tile (last dim of the block)
    f_work: int   # feature extent handed to the kernel (== F unless padded)
    tt: int       # time tile (== T for the fused path)


def _divisor_tiles(f_pad):
    """Multiples of 128 that evenly divide f_pad, descending (always has 128)."""
    return [d for d in range(f_pad, 0, -_LANE) if f_pad % d == 0]


def _plan(b, t, f, itemsize, budget):
    f128 = pl.cdiv(f, _LANE) * _LANE
    # Per-element working set: double-buffered input + output blocks, plus
    # ~2 f32-sized in-kernel temporaries (f32 cast / normalized value).
    per_elem = 4 * itemsize + 8

    def fits(rows, lanes):
        return rows * lanes * per_elem <= budget

    # 1) Whole (T, F) slab per batch element: lane-dense full-F block, no pad.
    if fits(t, f128):
        tf = f
        if b == 1 and f % _LANE == 0 and f >= 2 * _LANE:
            # Megacore (v7x): create >= 2 grid steps so both TensorCores work.
            for d in _divisor_tiles(f):
                if f // d >= 2:
                    tf = d
                    break
        return _Plan("fused", tf, f, t)

    # 2) Feature-tiled fused pass; tile divides round_up(F,128) -> pad <= 127.
    for d in _divisor_tiles(f128):
        if fits(t, d):
            return _Plan("fused", d, f128, t)

    # 3) Long-T fallback: two pallas_calls, T tiled (bounded per-step VMEM).
    d = next(dd for dd in _divisor_tiles(f128) if dd <= _MAX_TF_TWO_PASS)
    if d >= f128:
        tf, f_work = f, f              # single feature tile -> no padding needed
    else:
        tf, f_work = d, f128
    lanes = pl.cdiv(tf, _LANE) * _LANE
    tt = max(8, (budget // (per_elem * lanes)) // 8 * 8)
    tt = min(tt, pl.cdiv(t, 8) * 8)
    return _Plan("two_pass", tf, f_work, int(tt))


# --------------------------------------------------------------------------- #
# Public wrapper
# --------------------------------------------------------------------------- #
def cmvn(x: jax.Array, var_norm: bool = False, *,
         _vmem_budget_override=None) -> jax.Array:
    """CMVN over axis 1 of a (B, T, F) array (matches CMVN.forward)."""
    b, t, f = x.shape
    itemsize = jnp.dtype(x.dtype).itemsize
    budget, vmem_limit = _vmem_caps()
    if _vmem_budget_override is not None:   # test hook: force tiled paths
        budget = int(_vmem_budget_override)
    plan = _plan(b, t, f, itemsize, budget)

    # Pad F only when the feature axis is genuinely tiled and F % 128 != 0.
    if plan.f_work != f:
        x_in = jnp.pad(x, ((0, 0), (0, 0), (0, plan.f_work - f)))
    else:
        x_in = x
    f_work = plan.f_work
    n_ft = f_work // plan.tf
    n_elems = b * t * f_work

    if plan.kind == "fused":
        kernel = functools.partial(_cmvn_fused_kernel, var_norm=var_norm, t=t)
        out = pl.pallas_call(
            kernel,
            out_shape=jax.ShapeDtypeStruct((b, t, f_work), x.dtype),
            grid_spec=pltpu.PrefetchScalarGridSpec(
                num_scalar_prefetch=0,
                grid=(b, n_ft),
                in_specs=[pl.BlockSpec((1, t, plan.tf), lambda i, j: (i, 0, j))],
                out_specs=pl.BlockSpec((1, t, plan.tf), lambda i, j: (i, 0, j)),
            ),
            compiler_params=pltpu.CompilerParams(
                dimension_semantics=("parallel", "parallel"),
                vmem_limit_bytes=vmem_limit,
            ),
            cost_estimate=pl.CostEstimate(
                flops=int(n_elems * (6 if var_norm else 3)),
                transcendentals=int(b * f_work) if var_norm else 0,
                bytes_accessed=int(2 * n_elems * itemsize),
            ),
        )(x_in)
    else:
        tt = plan.tt
        n_tt = pl.cdiv(t, tt)
        stats_shape = jax.ShapeDtypeStruct((b, 1, f_work), jnp.float32)
        stats_kernel = functools.partial(
            _cmvn_stats_kernel, var_norm=var_norm, t=t, tt=tt)
        mean, scale = pl.pallas_call(
            stats_kernel,
            out_shape=(stats_shape, stats_shape),
            grid_spec=pltpu.PrefetchScalarGridSpec(
                num_scalar_prefetch=0,
                grid=(b, n_ft, n_tt),
                in_specs=[pl.BlockSpec((1, tt, plan.tf),
                                       lambda i, j, k: (i, k, j))],
                out_specs=[pl.BlockSpec((1, 1, plan.tf),
                                        lambda i, j, k: (i, 0, j)),
                           pl.BlockSpec((1, 1, plan.tf),
                                        lambda i, j, k: (i, 0, j))],
                scratch_shapes=[pltpu.VMEM((1, 1, plan.tf), jnp.float32),
                                pltpu.VMEM((1, 1, plan.tf), jnp.float32)],
            ),
            compiler_params=pltpu.CompilerParams(
                dimension_semantics=("parallel", "parallel", "arbitrary"),
                vmem_limit_bytes=vmem_limit,
            ),
            cost_estimate=pl.CostEstimate(
                flops=int(n_elems * (4 if var_norm else 2)),
                transcendentals=int(b * f_work) if var_norm else 0,
                bytes_accessed=int(n_elems * itemsize + 8 * b * f_work),
            ),
        )(x_in)

        out = pl.pallas_call(
            _cmvn_apply_kernel,
            out_shape=jax.ShapeDtypeStruct((b, t, f_work), x.dtype),
            grid_spec=pltpu.PrefetchScalarGridSpec(
                num_scalar_prefetch=0,
                grid=(b, n_ft, n_tt),
                in_specs=[pl.BlockSpec((1, tt, plan.tf),
                                       lambda i, j, k: (i, k, j)),
                          pl.BlockSpec((1, 1, plan.tf),
                                       lambda i, j, k: (i, 0, j)),
                          pl.BlockSpec((1, 1, plan.tf),
                                       lambda i, j, k: (i, 0, j))],
                out_specs=pl.BlockSpec((1, tt, plan.tf),
                                       lambda i, j, k: (i, k, j)),
            ),
            compiler_params=pltpu.CompilerParams(
                dimension_semantics=("parallel", "parallel", "parallel"),
                vmem_limit_bytes=vmem_limit,
            ),
            cost_estimate=pl.CostEstimate(
                flops=int(2 * n_elems),
                transcendentals=0,
                bytes_accessed=int(2 * n_elems * itemsize + 8 * b * f_work),
            ),
        )(x_in, mean, scale)

    if f_work != f:
        out = out[:, :, :f]
    return out


# --------------------------------------------------------------------------- #
# Reference + tests
# --------------------------------------------------------------------------- #
def _cmvn_ref(x, var_norm=False):
    x32 = x.astype(jnp.float32)
    mean = jnp.mean(x32, axis=1, keepdims=True)
    y = x32 - mean
    if var_norm:
        var = jnp.sum((x32 - mean) ** 2, axis=1, keepdims=True) / max(x.shape[1] - 1, 1)
        y = y / jnp.sqrt(var + EPSILON)
    return y.astype(x.dtype)


if __name__ == "__main__":
    key = jax.random.PRNGKey(0)
    B, T, F = 2, 16, 32          # small; F < 128 exercises the full-F (no-pad) block
    x = jax.random.normal(key, (B, T, F), dtype=jnp.float32)

    y0 = jax.block_until_ready(cmvn(x, var_norm=False))
    y1 = jax.block_until_ready(cmvn(x, var_norm=True))
    r0 = _cmvn_ref(x, var_norm=False)
    r1 = _cmvn_ref(x, var_norm=True)
    assert y0.shape == x.shape and y1.shape == x.shape
    assert jnp.allclose(y0, r0, atol=1e-5, rtol=1e-5)
    assert jnp.allclose(y1, r1, atol=1e-4, rtol=1e-4)

    # bf16 input (f32 accumulation inside the kernel).
    xb = x.astype(jnp.bfloat16)
    yb = jax.block_until_ready(cmvn(xb, var_norm=True))
    rb = _cmvn_ref(xb, var_norm=True)
    assert jnp.allclose(yb.astype(jnp.float32), rb.astype(jnp.float32),
                        atol=5e-2, rtol=5e-2)

    # Force the feature-tiled fused path (F=160 -> padded to 256, TF=128).
    x2 = jax.random.normal(jax.random.PRNGKey(1), (2, 24, 160), dtype=jnp.float32)
    y2 = jax.block_until_ready(cmvn(x2, var_norm=True, _vmem_budget_override=100_000))
    r2 = _cmvn_ref(x2, var_norm=True)
    assert y2.shape == x2.shape
    assert jnp.allclose(y2, r2, atol=1e-4, rtol=1e-4)

    # Force the long-T two-pass path (T=50 tiled by 8, incl. a masked partial tile).
    x3 = jax.random.normal(jax.random.PRNGKey(2), (2, 50, 96), dtype=jnp.float32)
    y3 = jax.block_until_ready(cmvn(x3, var_norm=True, _vmem_budget_override=20_000))
    r3 = _cmvn_ref(x3, var_norm=True)
    assert y3.shape == x3.shape
    assert jnp.allclose(y3, r3, atol=1e-4, rtol=1e-4)

    y3m = jax.block_until_ready(cmvn(x3, var_norm=False, _vmem_budget_override=20_000))
    assert jnp.allclose(y3m, _cmvn_ref(x3, var_norm=False), atol=1e-5, rtol=1e-5)

    print("KERNEL_OK")
</pallas_src>

<mosaic_0001>
module attributes {stable_mosaic.version = 11 : i64} {
  func.func @_cmvn_fused_kernel(%arg0: i32, %arg1: i32, %arg2: memref<1x16x32xf32, #tpu.memory_space<vmem>>, %arg3: memref<1x16x32xf32, #tpu.memory_space<vmem>>) attributes {dimension_semantics = [#tpu.dimension_semantics<parallel>, #tpu.dimension_semantics<parallel>], iteration_bounds = array<i64: 2, 1>, scalar_prefetch = 0 : i64, scratch_operands = 0 : i64, tpu.core_type = #tpu.core_type<tc>, window_params = [{transform_indices = @transform_0, window_bounds = array<i64: 1, 16, 32>}, {transform_indices = @transform_1, window_bounds = array<i64: 1, 16, 32>}]} {
    %c0 = arith.constant 0 : index
    %c0_0 = arith.constant 0 : index
    %c0_1 = arith.constant 0 : index
    %0 = vector.load %arg2[%c0, %c0_0, %c0_1] : memref<1x16x32xf32, #tpu.memory_space<vmem>>, vector<1x16x32xf32>
    %cst = arith.constant dense<0.000000e+00> : vector<1x32xf32>
    %1 = vector.multi_reduction <add>, %0, %cst [1] : vector<1x16x32xf32> to vector<1x32xf32>
    %2 = vector.shape_cast %1 : vector<1x32xf32> to vector<1x1x32xf32>
    %cst_2 = arith.constant 6.250000e-02 : f32
    %3 = vector.broadcast %cst_2 : f32 to vector<1x1x32xf32>
    %4 = arith.mulf %2, %3 : vector<1x1x32xf32>
    %5 = vector.broadcast %4 : vector<1x1x32xf32> to vector<1x16x32xf32>
    %6 = arith.subf %0, %5 : vector<1x16x32xf32>
    %c0_3 = arith.constant 0 : index
    %c0_4 = arith.constant 0 : index
    %c0_5 = arith.constant 0 : index
    %7 = vector.load %arg3[%c0_3, %c0_4, %c0_5] : memref<1x16x32xf32, #tpu.memory_space<vmem>>, vector<1x16x32xf32>
    tpu.vector_store %arg3[%c0_3, %c0_4, %c0_5], %6 {strides = array<i32>} : memref<1x16x32xf32, #tpu.memory_space<vmem>>, vector<1x16x32xf32>,
    return
  }
  func.func @transform_0(%arg0: i32, %arg1: i32) -> (i32, i32, i32) {
    %c0_i32 = arith.constant 0 : i32
    %c0_i32_0 = arith.constant 0 : i32
    return %arg0, %c0_i32, %arg1 : i32, i32, i32
  }
  func.func @transform_1(%arg0: i32, %arg1: i32) -> (i32, i32, i32) {
    %c0_i32 = arith.constant 0 : i32
    %c0_i32_0 = arith.constant 0 : i32
    return %arg0, %c0_i32, %arg1 : i32, i32, i32
  }
}

</mosaic_0001>

<llo_original>
// kernel: tpu_custom_call.1
$region0: #{tpu_custom_call.1}
  #allocation0 [shape = 'u32[]', space=smem, size = 0x4, offset = 0x4, fixed_abs, tag = 'smem constant byte address 0x4 - core index']
  #allocation1 [shape = 'u32[144,128]{1,0:T(1,128)}', space=vmem, size = 0x12000, scoped, tag = 'internal scratch']
  %s0 = inlined_call_operand.hbm [shape: f32[2,16,32], index: 0, kind: input, shape index: {}]
  %s1 = inlined_call_operand.hbm [shape: f32[2,16,32], index: 1, kind: output, shape index: {}]
  %s2 = sld [smem:[#allocation0]]
  $region41: #{tpu_custom_call.1} parent=0
    _
  %s4 = ssub.s32 1, %s2
  %s5 = scalar_select 0, %s4, %s2
  $region1: #{tpu_custom_call.1} parent=0
    #allocation2 [shape = 'u8[16384]{0}', space=vmem, size = 0x4000, scoped, tag = 'input window, operand 0']
    #allocation3 [shape = 's32[2]{0}', space=sflag, size = 0x8, scoped, tag = 'scoped memory for tpu_custom_call.1']
    #allocation4 [shape = 's32[2]{0}', space=sflag, size = 0x8, scoped, tag = 'scoped memory for tpu_custom_call.1']
    #allocation5 [shape = 'u8[16384]{0}', space=vmem, size = 0x4000, scoped, tag = 'output window, operand 0']
    %6 = vsyncpa [#allocation3], 0
    %s7 = scalar_lea.sflag [#allocation3], 1
    %8 = vsyncpa %s7, 0
    %9 = vsyncpa [#allocation4], 0
    %s10 = scalar_lea.sflag [#allocation4], 1
    %11 = vsyncpa %s10, 0
    loop: start=0, step=1, limit=4
    $region2: #{tpu_custom_call.1} parent=1 // loop_pre_header
      _
    $region3: #{tpu_custom_call.1} parent=1 // loop_header
      %s13 = sphi 0, %s17
      %p14 = scmp.ge.s32.totalorder %s13, 4
      %s20 = sphi 0, %s32
      %s21 = sphi 0, %s28
      %s22 = sphi 0, %s20
      %s23 = sphi 0, %s21
      %s24 = sphi 0, %s22
      %s25 = sphi 0, %s23
      %s37 = sphi 0, %s39
      %s40 = sphi 0, %s37
      %s41 = sphi 0, %s40
      %s57 = sphi 0, %s41
      %s65 = sphi 0, %s67
      %s68 = sphi 0, %s65
      %s69 = sphi 0, %s68
      %s85 = sphi 0, %s69
    $region4: #{tpu_custom_call.1} parent=1 // loop_header_branch
      %16 = sbr.rel (%p14) target = $region8
    $region5: #{tpu_custom_call.1} parent=1 // loop_body
      %s18 = ssub.s32 %s13, 1
      %s19 = ssub.s32 %s13, 2
      %s26 = sadd.s32 1, %s21
      %p27 = scmp.ge.s32.totalorder %s26, 1
      %s28 = scalar_select %p27, 0, %s26
      %s29 = sadd.s32 1, %s20
      %s30 = scalar_select %p27, %s29, %s20
      %p31 = scmp.ge.s32.totalorder %s30, 2
      %s32 = scalar_select %p31, 0, %s30
      %s33 = ssub.s32 %s20, %s32
      %s34 = ssub.s32 %s21, %s28
      %s35 = sor.u32 %s33, %s34
      %p36 = scmp.eq.s32.totalorder %s35, 0
      %s38 = sadd.s32 %s37, 1
      %s39 = scalar_select %p36, %s37, %s38
      %p42 = pneg %p36
      %p43 = scmp.eq.s32.totalorder %s13, 1
      %p44 = por %p42, %p43
      %p45 = scmp.ne.s32.totalorder %s37, %s40
      %p46 = scmp.eq.s32.totalorder %s13, 0
      %p47 = por %p45, %p46
      %p48 = scmp.ne.s32.totalorder %s37, %s40
      %p49 = scmp.eq.s32.totalorder %s18, 1
      %p50 = por %p48, %p49
      %p51 = scmp.ne.s32.totalorder %s40, %s41
      %p52 = scmp.eq.s32.totalorder %s18, 0
      %p53 = por %p51, %p52
      %p54 = scmp.ne.s32.totalorder %s40, %s41
      %p55 = scmp.eq.s32.totalorder %s19, 1
      %p56 = por %p54, %p55
      %p58 = scmp.ne.s32.totalorder %s41, %s57
      %p59 = scmp.eq.s32.totalorder %s19, 0
      %p60 = por %p58, %p59
      %s61 = ssub.s32 %s20, %s32
      %s62 = ssub.s32 %s21, %s28
      %s63 = sor.u32 %s61, %s62
      %p64 = scmp.eq.s32.totalorder %s63, 0
      %s66 = sadd.s32 %s65, 1
      %s67 = scalar_select %p64, %s65, %s66
      %p70 = pneg %p64
      %p71 = scmp.eq.s32.totalorder %s13, 1
      %p72 = por %p70, %p71
      %p73 = scmp.ne.s32.totalorder %s65, %s68
      %p74 = scmp.eq.s32.totalorder %s13, 0
      %p75 = por %p73, %p74
      %p76 = scmp.ne.s32.totalorder %s65, %s68
      %p77 = scmp.eq.s32.totalorder %s18, 1
      %p78 = por %p76, %p77
      %p79 = scmp.ne.s32.totalorder %s68, %s69
      %p80 = scmp.eq.s32.totalorder %s18, 0
      %p81 = por %p79, %p80
      %p82 = scmp.ne.s32.totalorder %s68, %s69
      %p83 = scmp.eq.s32.totalorder %s19, 1
      %p84 = por %p82, %p83
      %p86 = scmp.ne.s32.totalorder %s69, %s85
      %p87 = scmp.eq.s32.totalorder %s19, 0
      %p88 = por %p86, %p87
      %p89 = scmp.le.s32.totalorder 1, %s13
      %p90 = scmp.lt.s32.totalorder %s13, 3
      %p91 = pnand %p89, %p90
      %p92 = pneg %p91
      // Predicated region
      $region9: #{tpu_custom_call.1} parent=5 // pred_check
        _
      $region10: #{tpu_custom_call.1} parent=5 // pred_check_branch
        %94 = sbr.rel (%p91) target = $region12
      $region11: #{tpu_custom_call.1} parent=5 // pred_region
        %s95 = ssub.s32 %s13, 1
      $region12: #{tpu_custom_call.1} parent=5 // pred_fallthru
        _
      %p96 = scmp.lt.s32.totalorder %s13, 2
      // Predicated region
      $region13: #{tpu_custom_call.1} parent=5 // pred_check
        %p97 = pneg %p96
      $region14: #{tpu_custom_call.1} parent=5 // pred_check_branch
        %99 = sbr.rel (%p97) target = $region16
      $region15: #{tpu_custom_call.1} parent=5 // pred_region
        // Predicated region
        $region17: #{tpu_custom_call.1} parent=15 // pred_check
          %p100 = pneg %p47
        $region18: #{tpu_custom_call.1} parent=15 // pred_check_branch
          %102 = sbr.rel (%p100) target = $region20
        $region19: #{tpu_custom_call.1} parent=15 // pred_region
          %s103 = sand.u32 %s37, 1
          %s104 = scalar_lea.sflag [#allocation3], %s103
          %s105 = sand.u32 %s37, 1
          %s106 = smul.addr %s105, 16
          %s107 = scalar_lea.vmem [#allocation2], %s106
          %s109 = ssub.s32 256, 256
          %110 = vsyncadd %s104, %s109
          %s111 = smul.addr %s20, 2
          %s112 = sadd.s32 %s21, %s111
          %s113 = smul.addr %s112, 128
          %s114 = scalar_lea.hbm %s0, %s113
          %s115 = sshll.u32 %s107, 4
          %s116 = int_to_ptr.vmem [resolvable:$true] %s115
          %121 = dma.hbm_to_vmem [thread:$0]  %s114, 256, %s116, %s104, 128, 128, 8
        $region20: #{tpu_custom_call.1} parent=15 // pred_fallthru
          _
      $region16: #{tpu_custom_call.1} parent=5 // pred_fallthru
        _
      %p122 = scmp.le.s32.totalorder 1, %s13
      %p123 = scmp.lt.s32.totalorder %s13, 3
      %p124 = pnand %p122, %p123
      %p125 = pneg %p124
      // Predicated region
      $region21: #{tpu_custom_call.1} parent=5 // pred_check
        _
      $region22: #{tpu_custom_call.1} parent=5 // pred_check_branch
        %127 = sbr.rel (%p124) target = $region24
      $region23: #{tpu_custom_call.1} parent=5 // pred_region
        %s128 = ssub.s32 %s13, 1
        %s129 = sand.u32 %s40, 1
        %s130 = scalar_lea.sflag [#allocation3], %s129
        %s131 = sand.u32 %s40, 1
        %s132 = smul.addr %s131, 16
        %s133 = scalar_lea.vmem [#allocation2], %s132
        // Predicated region
        $region25: #{tpu_custom_call.1} parent=23 // pred_check
          %p134 = pneg %p53
        $region26: #{tpu_custom_call.1} parent=23 // pred_check_branch
          %136 = sbr.rel (%p134) target = $region28
        $region27: #{tpu_custom_call.1} parent=23 // pred_region
          %137 = dma.done %s130, 256
        $region28: #{tpu_custom_call.1} parent=23 // pred_fallthru
          _
        %s138 = sand.u32 %s40, 1
        %s139 = scalar_lea.sflag [#allocation3], %s138
        %s140 = sand.u32 %s40, 1
        %s141 = smul.addr %s140, 16
        %s142 = scalar_lea.vmem [#allocation2], %s141
        %p143 = pneg %p53
        %p144 = pneg %p50
        %p145 = pneg %p81
        %p146 = pneg %p78
        %s147 = sand.u32 %s68, 1
        %s148 = scalar_lea.sflag [#allocation4], %s147
        %s149 = sand.u32 %s68, 1
        %s150 = smul.addr %s149, 16
        %s151 = scalar_lea.vmem [#allocation5], %s150
        %v152 = vld [vmem:[%s133] sm:$0xff]
        %v153 = vld [vmem:[%s133 + $0x8] sm:$0xff]
        %vm154 = vcmask 261120
        %v155 = vsel %vm154, %v152, 0.0
        %v156 = vsel %vm154, %v153, 0.0
        %v157 = vadd.f32 %v155, %v156
        %v158 = vrot.slane %v157, 4
        %v159 = vadd.f32 %v157, %v158
        %v160 = vrot.slane %v159, 2
        %v161 = vadd.f32 %v159, %v160
        %v162 = vrot.slane %v161, 1
        %v163 = vadd.f32 %v161, %v162
        %v164 = vmul.f32 %v163, 0.0625
        %v165 = vsub.f32 %v152, %v164
        %v166 = vsub.f32 %v153, %v164
        %167 = vst.msk [vmem:[%s151] sm:$0xff] %vm154, %v165
        %168 = vst.msk [vmem:[%s151 + $0x8] sm:$0xff] %vm154, %v166
        %s169 = sand.u32 %s68, 1
        %s170 = scalar_lea.sflag [#allocation4], %s169
        %s171 = sand.u32 %s68, 1
        %s172 = smul.addr %s171, 16
        %s173 = scalar_lea.vmem [#allocation5], %s172
        // Predicated region
        $region29: #{tpu_custom_call.1} parent=23 // pred_check
          %p174 = pneg %p78
        $region30: #{tpu_custom_call.1} parent=23 // pred_check_branch
          %176 = sbr.rel (%p174) target = $region32
        $region31: #{tpu_custom_call.1} parent=23 // pred_region
          %s178 = ssub.s32 256, 256
          %179 = vsyncadd %s170, %s178
          %s180 = smul.addr %s22, 2
          %s181 = sadd.s32 %s23, %s180
          %s182 = smul.addr %s181, 128
          %s183 = scalar_lea.hbm %s1, %s182
          %s184 = sshll.u32 %s173, 4
          %s185 = int_to_ptr.vmem [resolvable:$true] %s184
          %190 = dma.vmem_to_hbm [thread:$0]  %s185, 256, %s183, %s170, 128, 128, 8
        $region32: #{tpu_custom_call.1} parent=23 // pred_fallthru
          _
      $region24: #{tpu_custom_call.1} parent=5 // pred_fallthru
        _
      %p191 = scmp.le.s32.totalorder 2, %s13
      // Predicated region
      $region33: #{tpu_custom_call.1} parent=5 // pred_check
        %p192 = pneg %p191
      $region34: #{tpu_custom_call.1} parent=5 // pred_check_branch
        %194 = sbr.rel (%p192) target = $region36
      $region35: #{tpu_custom_call.1} parent=5 // pred_region
        %s195 = ssub.s32 %s13, 2
        // Predicated region
        $region37: #{tpu_custom_call.1} parent=35 // pred_check
          %p196 = pneg %p84
        $region38: #{tpu_custom_call.1} parent=35 // pred_check_branch
          %198 = sbr.rel (%p196) target = $region40
        $region39: #{tpu_custom_call.1} parent=35 // pred_region
          %s199 = sand.u32 %s69, 1
          %s200 = scalar_lea.sflag [#allocation4], %s199
          %s201 = sand.u32 %s69, 1
          %s202 = smul.addr %s201, 16
          %s203 = scalar_lea.vmem [#allocation5], %s202
          %204 = dma.done %s200, 256
        $region40: #{tpu_custom_call.1} parent=35 // pred_fallthru
          _
      $region36: #{tpu_custom_call.1} parent=5 // pred_fallthru
        _
    $region6: #{tpu_custom_call.1} parent=1 // loop_footer
      %s17 = sadd.s32 1, %s13
    $region7: #{tpu_custom_call.1} parent=1 // loop_footer_branch
      %12 = sbr.rel target = $region3
    $region8: #{tpu_custom_call.1} parent=1 // loop_exit
      _
    %205 = vsyncpa [#allocation3], 1
    %s206 = scalar_lea.sflag [#allocation3], 1
    %207 = vsyncpa %s206, 1
    %208 = vsyncpa [#allocation4], 1
    %s209 = scalar_lea.sflag [#allocation4], 1
    %210 = vsyncpa %s209, 1

</llo_original>
